<compile_context>
chip_gen: v7x
topology: tpu7x:2x2x1
jax: 0.10.0
libtpu: 0.0.40
codegen_flags: <defaults>
</compile_context>

<pallas_src>
import jax
import jax.numpy as jnp
from jax.experimental import pallas as pl
from jax.experimental.pallas import tpu as pltpu

LANE = 128                 # lane width: last-dim alignment
DEFAULT_MAX_TILE_N = 512   # row-tile cap (rows of x per grid step)


def _cdiv(a, b):
    return -(-a // b)


def _round_up(x, m):
    return _cdiv(x, m) * m


def _vmem_budget():
    """(physical, usable) per-core VMEM bytes, generation-aware."""
    try:
        phys = int(pltpu.get_tpu_info().vmem_capacity_bytes)
    except Exception:
        phys = 64 << 20  # conservative fallback (v7x per-TC size)
    headroom = max((phys * 3) // 16, 8 << 20)   # compiler scratch / spill slack
    usable = max(phys - headroom, 16 << 20)     # ~104 MiB on 128 MiB chips, ~52 MiB on v7x
    return phys, usable


def _residual_mlp_kernel(x_ref, w1_ref, b1_ref, w2_ref, b2_ref, o_ref):
    """Resident-weights path: one (tile_n, Hp) row tile of x per grid step."""
    x = x_ref[...]
    # Matmuls on the MXU in the weights' dtype, f32 accumulation.
    h = jnp.dot(x.astype(w1_ref.dtype), w1_ref[...],
                preferred_element_type=jnp.float32) + b1_ref[...]
    h = jnp.maximum(h, 0.0)                                   # f32 on the VPU
    y = jnp.dot(h.astype(w2_ref.dtype), w2_ref[...],
                preferred_element_type=jnp.float32) + b2_ref[...]
    o_ref[...] = (x.astype(jnp.float32) + y).astype(o_ref.dtype)


def _residual_mlp_ktiled_kernel(x_ref, w1_ref, b1_ref, w2_ref, b2_ref, o_ref, acc_ref):
    """Hidden-dim-tiled path (large H / small VMEM): accumulate over k chunks."""
    k = pl.program_id(1)

    @pl.when(k == 0)
    def _():
        acc_ref[...] = jnp.zeros_like(acc_ref)

    x = x_ref[...]
    h = jnp.dot(x.astype(w1_ref.dtype), w1_ref[...],
                preferred_element_type=jnp.float32) + b1_ref[...]
    h = jnp.maximum(h, 0.0)
    acc_ref[...] += jnp.dot(h.astype(w2_ref.dtype), w2_ref[...],
                            preferred_element_type=jnp.float32)

    @pl.when(k == pl.num_programs(1) - 1)
    def _():
        o_ref[...] = (x.astype(jnp.float32) + acc_ref[...] + b2_ref[...]).astype(o_ref.dtype)


def make_residual_mlp(w1, b1, w2, b2, *,
                      max_tile_n=DEFAULT_MAX_TILE_N,
                      matmul_dtype=jnp.bfloat16,
                      k_tile=None):
    """Build forward(x) = x + relu(x @ w1 + b1) @ w2 + b2 as a Pallas TPU kernel.

    Weights are stored (in, out).  Padding + matmul-dtype cast of the weights
    happens ONCE here (hoisted out of the per-call hot path); the returned
    function is jitted and closes over the prepared device arrays.

    matmul_dtype=jnp.float32 gives an f32-parity variant (no bf16 operand
    rounding); jnp.bfloat16 (default) uses the MXU's bf16 path.
    k_tile forces the hidden-dim-tiled path with that chunk width; None -> auto
    (resident weights whenever they fit in the generation's VMEM budget).
    """
    H = int(w1.shape[0])
    assert w1.shape == (H, H) and w2.shape == (H, H)
    assert b1.reshape(-1).shape[0] == H and b2.reshape(-1).shape[0] == H
    Hp = _round_up(H, LANE)
    pad = Hp - H
    wdt = jnp.dtype(matmul_dtype)

    # One-time weight/bias prep (zero padding is exact for this op).
    w1p = jax.device_put(jnp.pad(jnp.asarray(w1, jnp.float32), ((0, pad), (0, pad))).astype(wdt))
    w2p = jax.device_put(jnp.pad(jnp.asarray(w2, jnp.float32), ((0, pad), (0, pad))).astype(wdt))
    b1p = jax.device_put(jnp.pad(jnp.asarray(b1, jnp.float32).reshape(1, H), ((0, 0), (0, pad))))
    b2p = jax.device_put(jnp.pad(jnp.asarray(b2, jnp.float32).reshape(1, H), ((0, 0), (0, pad))))
    # TODO(synk): optional int8 (v5e/v6e) / fp8 (v7x) weight quantization would halve
    # resident VMEM again but changes numerics vs the f32 module, so it is not default.

    phys_vmem, usable_vmem = _vmem_budget()
    resident_w = 2 * Hp * Hp * wdt.itemsize + 2 * Hp * 4   # single-buffered W1/W2 + f32 b1/b2

    # Decide resident-weights vs hidden-dim-tiled (large H / v7x 64 MiB VMEM).
    if k_tile is not None:
        use_k_tile = True
        tk = _round_up(min(int(k_tile), Hp), LANE)
    else:
        use_k_tile = resident_w > (usable_vmem * 6) // 10
        if use_k_tile:
            # Per-step W1/W2 chunks are double-buffered: 2*(Hp*tk + tk*Hp)*wsize bytes.
            tk = max((usable_vmem // 2) // (4 * Hp * wdt.itemsize), LANE)
            tk = min(_round_up(tk, LANE), Hp)
        else:
            tk = Hp
    if use_k_tile:
        # tk must evenly divide Hp (both are multiples of 128).
        m = Hp // LANE
        t = max(1, min(tk // LANE, m))
        while m % t:
            t -= 1
        tk = t * LANE
    grid_k = Hp // tk

    if use_k_tile:
        weight_bytes = (2 * (Hp * tk + tk * Hp) * wdt.itemsize   # dbl-buffered W1/W2 chunks
                        + 2 * tk * 4 + Hp * 4)                   # dbl-buffered b1 chunk + b2
    else:
        weight_bytes = resident_w

    def _row_tiling(n_rows, x_itemsize, o_itemsize):
        min_row = max(8, 32 // min(x_itemsize, o_itemsize))  # sublane / packed-dtype guard
        np0 = _round_up(n_rows, min_row)
        grid_n = _cdiv(np0, max_tile_n)
        if np0 >= 2 * min_row:
            grid_n = max(grid_n, 2)            # keep both v7x TensorCores busy
        tile_n = _round_up(_cdiv(np0, grid_n), min_row)      # balanced tiles, no over-pad
        # VMEM cap on tile_n: double-buffered x/out tiles (+ f32 accumulator if k-tiled).
        per_row = 2 * Hp * (x_itemsize + o_itemsize) + (4 * Hp if use_k_tile else 0)
        budget = usable_vmem - weight_bytes - (2 << 20)
        cap = max(budget // per_row, min_row) // min_row * min_row
        tile_n = max(min(tile_n, cap), min_row)
        grid_n = _cdiv(np0, tile_n)
        return tile_n, grid_n, tile_n * grid_n

    @jax.jit
    def forward(x):
        assert x.ndim == 2 and x.shape[1] == H, x.shape
        N = x.shape[0]
        isz = jnp.dtype(x.dtype).itemsize
        tile_n, grid_n, Np = _row_tiling(N, isz, isz)

        xp = x
        if Np != N or Hp != H:                       # pad only when actually needed
            xp = jnp.pad(x, ((0, Np - N), (0, Hp - H)))

        acc_bytes = tile_n * Hp * 4 if use_k_tile else 0
        streamed = 2 * tile_n * Hp * 2 * isz         # double-buffered x + out tiles
        vmem_limit = int(min(max(weight_bytes + acc_bytes + streamed + (2 << 20), 8 << 20),
                             phys_vmem))

        if not use_k_tile:
            grid_spec = pltpu.PrefetchScalarGridSpec(
                num_scalar_prefetch=0,
                grid=(grid_n,),
                in_specs=[
                    pl.BlockSpec((tile_n, Hp), lambda i: (i, 0)),                             # x
                    pl.BlockSpec((Hp, Hp), lambda i: (0, 0), pipeline_mode=pl.Buffered(1)),   # W1
                    pl.BlockSpec((1, Hp), lambda i: (0, 0), pipeline_mode=pl.Buffered(1)),    # b1
                    pl.BlockSpec((Hp, Hp), lambda i: (0, 0), pipeline_mode=pl.Buffered(1)),   # W2
                    pl.BlockSpec((1, Hp), lambda i: (0, 0), pipeline_mode=pl.Buffered(1)),    # b2
                ],
                out_specs=pl.BlockSpec((tile_n, Hp), lambda i: (i, 0)),
            )
            out = pl.pallas_call(
                _residual_mlp_kernel,
                out_shape=jax.ShapeDtypeStruct((Np, Hp), x.dtype),
                grid_spec=grid_spec,
                compiler_params=pltpu.CompilerParams(
                    dimension_semantics=("parallel",),
                    vmem_limit_bytes=vmem_limit,
                ),
            )(xp, w1p, b1p, w2p, b2p)
        else:
            grid_spec = pltpu.PrefetchScalarGridSpec(
                num_scalar_prefetch=0,
                grid=(grid_n, grid_k),
                in_specs=[
                    pl.BlockSpec((tile_n, Hp), lambda i, k: (i, 0)),   # x (revisited over k)
                    pl.BlockSpec((Hp, tk), lambda i, k: (0, k)),       # W1 column chunk
                    pl.BlockSpec((1, tk), lambda i, k: (0, k)),        # b1 chunk
                    pl.BlockSpec((tk, Hp), lambda i, k: (k, 0)),       # W2 row chunk
                    pl.BlockSpec((1, Hp), lambda i, k: (0, 0), pipeline_mode=pl.Buffered(1)),  # b2
                ],
                out_specs=pl.BlockSpec((tile_n, Hp), lambda i, k: (i, 0)),
                scratch_shapes=[pltpu.VMEM((tile_n, Hp), jnp.float32)],
            )
            out = pl.pallas_call(
                _residual_mlp_ktiled_kernel,
                out_shape=jax.ShapeDtypeStruct((Np, Hp), x.dtype),
                grid_spec=grid_spec,
                compiler_params=pltpu.CompilerParams(
                    dimension_semantics=("parallel", "arbitrary"),
                    vmem_limit_bytes=vmem_limit,
                ),
            )(xp, w1p, b1p, w2p, b2p)

        if Np != N or Hp != H:                       # slice only when actually padded
            out = out[:N, :H]
        return out

    return forward


def reference_forward_f32(x, w1, b1, w2, b2):
    h = jnp.maximum(x @ w1 + b1.reshape(1, -1), 0.0)
    return x + (h @ w2 + b2.reshape(1, -1))


def reference_forward_bf16(x, w1, b1, w2, b2):
    # Mirrors the kernel's bf16-operand / f32-accumulate matmuls.
    h = jnp.dot(x.astype(jnp.bfloat16), w1.astype(jnp.bfloat16),
                preferred_element_type=jnp.float32) + b1.reshape(1, -1)
    h = jnp.maximum(h, 0.0)
    y = jnp.dot(h.astype(jnp.bfloat16), w2.astype(jnp.bfloat16),
                preferred_element_type=jnp.float32) + b2.reshape(1, -1)
    return x + y


if __name__ == "__main__":
    key = jax.random.PRNGKey(0)

    # ---- demo shapes consistent with the module: batch=16, hidden=32 --------
    N, H = 16, 32
    k_x, k_w1, k_b1, k_w2, k_b2 = jax.random.split(key, 5)
    scale = 1.0 / jnp.sqrt(jnp.float32(H))
    x = jax.random.normal(k_x, (N, H), dtype=jnp.float32)
    w1 = jax.random.uniform(k_w1, (H, H), jnp.float32, -scale, scale)
    b1 = jax.random.uniform(k_b1, (H,), jnp.float32, -scale, scale)
    w2 = jax.random.uniform(k_w2, (H, H), jnp.float32, -scale, scale)
    b2 = jax.random.uniform(k_b2, (H,), jnp.float32, -scale, scale)

    fwd = make_residual_mlp(w1, b1, w2, b2)                      # resident-weights path
    out = jax.block_until_ready(fwd(x))
    assert out.shape == (N, H) and out.dtype == x.dtype

    ref_bf16 = reference_forward_bf16(x, w1, b1, w2, b2)
    assert jnp.allclose(out, ref_bf16, atol=5e-3, rtol=5e-3), "mismatch vs bf16 ref"
    ref_f32 = reference_forward_f32(x, w1, b1, w2, b2)
    assert jnp.allclose(out, ref_f32, atol=3e-2, rtol=3e-2), "mismatch vs f32 ref"

    # ---- exercise the hidden-dim-tiled (large-H / v7x) path at small size ----
    H2, N2 = 256, 48
    k_x2, k_w3, k_b3, k_w4, k_b4 = jax.random.split(jax.random.PRNGKey(1), 5)
    scale2 = 1.0 / jnp.sqrt(jnp.float32(H2))
    x2 = jax.random.normal(k_x2, (N2, H2), dtype=jnp.float32)
    w3 = jax.random.uniform(k_w3, (H2, H2), jnp.float32, -scale2, scale2)
    b3 = jax.random.uniform(k_b3, (H2,), jnp.float32, -scale2, scale2)
    w4 = jax.random.uniform(k_w4, (H2, H2), jnp.float32, -scale2, scale2)
    b4 = jax.random.uniform(k_b4, (H2,), jnp.float32, -scale2, scale2)

    fwd_kt = make_residual_mlp(w3, b3, w4, b4, k_tile=128)       # forces 2 hidden-dim chunks
    out2 = jax.block_until_ready(fwd_kt(x2))
    assert out2.shape == (N2, H2)
    ref2 = reference_forward_bf16(x2, w3, b3, w4, b4)
    assert jnp.allclose(out2, ref2, atol=5e-3, rtol=5e-3), "mismatch (k-tiled) vs bf16 ref"

    # ---- f32-parity variant (no bf16 operand rounding on the matmuls) -------
    fwd_f32 = make_residual_mlp(w1, b1, w2, b2, matmul_dtype=jnp.float32)
    out3 = jax.block_until_ready(fwd_f32(x))
    assert jnp.allclose(out3, ref_f32, atol=3e-2, rtol=3e-2), "mismatch (f32 variant)"

    print("KERNEL_OK")
</pallas_src>

<mosaic_0001>
module attributes {stable_mosaic.version = 11 : i64} {
  func.func @_residual_mlp_kernel(%arg0: i32, %arg1: memref<8x128xf32, #tpu.memory_space<vmem>>, %arg2: memref<128x128xbf16, #tpu.memory_space<vmem>>, %arg3: memref<1x128xf32, #tpu.memory_space<vmem>>, %arg4: memref<128x128xbf16, #tpu.memory_space<vmem>>, %arg5: memref<1x128xf32, #tpu.memory_space<vmem>>, %arg6: memref<8x128xf32, #tpu.memory_space<vmem>>) attributes {dimension_semantics = [#tpu.dimension_semantics<parallel>], iteration_bounds = array<i64: 2>, scalar_prefetch = 0 : i64, scratch_operands = 0 : i64, tpu.core_type = #tpu.core_type<tc>, window_params = [{transform_indices = @transform_0, window_bounds = array<i64: 8, 128>}, {pipeline_mode = #tpu.pipeline_mode<synchronous>, transform_indices = @transform_1, window_bounds = array<i64: 128, 128>}, {pipeline_mode = #tpu.pipeline_mode<synchronous>, transform_indices = @transform_2, window_bounds = array<i64: 1, 128>}, {pipeline_mode = #tpu.pipeline_mode<synchronous>, transform_indices = @transform_3, window_bounds = array<i64: 128, 128>}, {pipeline_mode = #tpu.pipeline_mode<synchronous>, transform_indices = @transform_4, window_bounds = array<i64: 1, 128>}, {transform_indices = @transform_5, window_bounds = array<i64: 8, 128>}]} {
    %c0 = arith.constant 0 : index
    %c0_0 = arith.constant 0 : index
    %0 = vector.load %arg1[%c0, %c0_0] : memref<8x128xf32, #tpu.memory_space<vmem>>, vector<8x128xf32>
    %1 = arith.truncf %0 : vector<8x128xf32> to vector<8x128xbf16>
    %c0_1 = arith.constant 0 : index
    %c0_2 = arith.constant 0 : index
    %2 = vector.load %arg2[%c0_1, %c0_2] : memref<128x128xbf16, #tpu.memory_space<vmem>>, vector<128x128xbf16>
    %cst = arith.constant dense<0.000000e+00> : vector<8x128xf32>
    %3 = tpu.matmul %1, %2, %cst {dimension_numbers = #tpu.dot_dimension_numbers<[1], [0], [0], [1], [0, 0, 1, 1], [], []>} : vector<8x128xbf16>, vector<128x128xbf16>, vector<8x128xf32> -> vector<8x128xf32>
    %c0_3 = arith.constant 0 : index
    %c0_4 = arith.constant 0 : index
    %4 = vector.load %arg3[%c0_3, %c0_4] : memref<1x128xf32, #tpu.memory_space<vmem>>, vector<1x128xf32>
    %5 = vector.broadcast %4 : vector<1x128xf32> to vector<8x128xf32>
    %6 = arith.addf %3, %5 : vector<8x128xf32>
    %cst_5 = arith.constant 0.000000e+00 : f32
    %7 = vector.broadcast %cst_5 : f32 to vector<8x128xf32>
    %8 = arith.maximumf %6, %7 : vector<8x128xf32>
    %9 = arith.truncf %8 : vector<8x128xf32> to vector<8x128xbf16>
    %c0_6 = arith.constant 0 : index
    %c0_7 = arith.constant 0 : index
    %10 = vector.load %arg4[%c0_6, %c0_7] : memref<128x128xbf16, #tpu.memory_space<vmem>>, vector<128x128xbf16>
    %cst_8 = arith.constant dense<0.000000e+00> : vector<8x128xf32>
    %11 = tpu.matmul %9, %10, %cst_8 {dimension_numbers = #tpu.dot_dimension_numbers<[1], [0], [0], [1], [0, 0, 1, 1], [], []>} : vector<8x128xbf16>, vector<128x128xbf16>, vector<8x128xf32> -> vector<8x128xf32>
    %c0_9 = arith.constant 0 : index
    %c0_10 = arith.constant 0 : index
    %12 = vector.load %arg5[%c0_9, %c0_10] : memref<1x128xf32, #tpu.memory_space<vmem>>, vector<1x128xf32>
    %13 = vector.broadcast %12 : vector<1x128xf32> to vector<8x128xf32>
    %14 = arith.addf %11, %13 : vector<8x128xf32>
    %15 = arith.addf %0, %14 : vector<8x128xf32>
    %c0_11 = arith.constant 0 : index
    %c0_12 = arith.constant 0 : index
    %16 = vector.load %arg6[%c0_11, %c0_12] : memref<8x128xf32, #tpu.memory_space<vmem>>, vector<8x128xf32>
    tpu.vector_store %arg6[%c0_11, %c0_12], %15 {strides = array<i32>} : memref<8x128xf32, #tpu.memory_space<vmem>>, vector<8x128xf32>,
    return
  }
  func.func @transform_0(%arg0: i32) -> (i32, i32) {
    %c0_i32 = arith.constant 0 : i32
    %c0_i32_0 = arith.constant 0 : i32
    return %arg0, %c0_i32 : i32, i32
  }
  func.func @transform_1(%arg0: i32) -> (i32, i32) {
    %c0_i32 = arith.constant 0 : i32
    %c0_i32_0 = arith.constant 0 : i32
    %c0_i32_1 = arith.constant 0 : i32
    return %c0_i32, %c0_i32_0 : i32, i32
  }
  func.func @transform_2(%arg0: i32) -> (i32, i32) {
    %c0_i32 = arith.constant 0 : i32
    %c0_i32_0 = arith.constant 0 : i32
    %c0_i32_1 = arith.constant 0 : i32
    return %c0_i32, %c0_i32_0 : i32, i32
  }
  func.func @transform_3(%arg0: i32) -> (i32, i32) {
    %c0_i32 = arith.constant 0 : i32
    %c0_i32_0 = arith.constant 0 : i32
    %c0_i32_1 = arith.constant 0 : i32
    return %c0_i32, %c0_i32_0 : i32, i32
  }
  func.func @transform_4(%arg0: i32) -> (i32, i32) {
    %c0_i32 = arith.constant 0 : i32
    %c0_i32_0 = arith.constant 0 : i32
    %c0_i32_1 = arith.constant 0 : i32
    return %c0_i32, %c0_i32_0 : i32, i32
  }
  func.func @transform_5(%arg0: i32) -> (i32, i32) {
    %c0_i32 = arith.constant 0 : i32
    %c0_i32_0 = arith.constant 0 : i32
    return %arg0, %c0_i32 : i32, i32
  }
}

</mosaic_0001>

<llo_original>
// kernel: forward.1
$region0: #{forward.1}
  #allocation0 [shape = 'u32[]', space=smem, size = 0x4, offset = 0x4, fixed_abs, tag = 'smem constant byte address 0x4 - core index']
  #allocation1 [shape = 'u32[144,128]{1,0:T(1,128)}', space=vmem, size = 0x12000, scoped, tag = 'internal scratch']
  %s0 = inlined_call_operand.vmem [shape: f32[16,128], index: 0, kind: input, shape index: {}]
  %s1 = inlined_call_operand.hbm [shape: bf16[128,128], index: 1, kind: input, shape index: {}]
  %s2 = inlined_call_operand.vmem [shape: f32[1,128], index: 2, kind: input, shape index: {}]
  %s3 = inlined_call_operand.hbm [shape: bf16[128,128], index: 3, kind: input, shape index: {}]
  %s4 = inlined_call_operand.vmem [shape: f32[1,128], index: 4, kind: input, shape index: {}]
  %s5 = inlined_call_operand.hbm [shape: f32[16,128], index: 5, kind: output, shape index: {}]
  %s6 = sld [smem:[#allocation0]]
  $region61: #{forward.1} parent=0
    _
  %s8 = ssub.s32 1, %s6
  %s9 = scalar_select 0, %s8, %s6
  $region1: #{forward.1} parent=0
    #allocation2 [shape = 'u8[32768]{0}', space=vmem, size = 0x8000, scoped, tag = 'input window, operand 1, single buffered']
    #allocation3 [shape = 's32[2]{0}', space=sflag, size = 0x8, scoped, tag = 'scoped memory for forward.1']
    #allocation4 [shape = 's32[2]{0}', space=sflag, size = 0x8, scoped, tag = 'scoped memory for forward.1']
    #allocation5 [shape = 'u8[32768]{0}', space=vmem, size = 0x8000, scoped, tag = 'input window, operand 3, single buffered']
    #allocation6 [shape = 's32[1]{0}', space=sflag, size = 0x4, scoped, tag = 'scoped memory for forward.1']
    #allocation7 [shape = 'u8[8192]{0}', space=vmem, size = 0x2000, scoped, tag = 'output window, operand 0']
    %10 = vsyncpa [#allocation3], 0
    %11 = vsyncpa [#allocation6], 0
    %12 = vsyncpa [#allocation4], 0
    %s13 = scalar_lea.sflag [#allocation4], 1
    %14 = vsyncpa %s13, 0
    loop: start=0, step=1, limit=4
    $region2: #{forward.1} parent=1 // loop_pre_header
      _
    $region3: #{forward.1} parent=1 // loop_header
      %s16 = sphi 0, %s20
      %p17 = scmp.ge.s32.totalorder %s16, 4
      %s26 = sphi 0, %s28
      %s29 = sphi 0, %s26
      %s30 = sphi 0, %s29
      %s46 = sphi 0, %s30
      %s50 = sphi 0, %s50
      %s52 = sphi 0, %s50
      %s53 = sphi 0, %s52
      %s67 = sphi 0, %s53
      %s71 = sphi 0, %s71
      %s73 = sphi 0, %s71
      %s74 = sphi 0, %s73
      %s88 = sphi 0, %s74
      %s92 = sphi 0, %s92
      %s94 = sphi 0, %s92
      %s95 = sphi 0, %s94
      %s109 = sphi 0, %s95
      %s113 = sphi 0, %s113
      %s115 = sphi 0, %s113
      %s116 = sphi 0, %s115
      %s130 = sphi 0, %s116
      %s136 = sphi 0, %s138
      %s139 = sphi 0, %s136
      %s140 = sphi 0, %s139
      %s156 = sphi 0, %s140
    $region4: #{forward.1} parent=1 // loop_header_branch
      %19 = sbr.rel (%p17) target = $region8
    $region5: #{forward.1} parent=1 // loop_body
      %s21 = ssub.s32 %s16, 1
      %s22 = ssub.s32 %s16, 2
      %s23 = sadd.s32 %s16, 1
      %s24 = ssub.s32 %s16, %s23
      %p25 = scmp.eq.s32.totalorder %s24, 0
      %s27 = sadd.s32 %s26, 1
      %s28 = scalar_select %p25, %s26, %s27
      %p31 = pneg %p25
      %p32 = scmp.eq.s32.totalorder %s16, 1
      %p33 = por %p31, %p32
      %p34 = scmp.ne.s32.totalorder %s26, %s29
      %p35 = scmp.eq.s32.totalorder %s16, 0
      %p36 = por %p34, %p35
      %p37 = scmp.ne.s32.totalorder %s26, %s29
      %p38 = scmp.eq.s32.totalorder %s21, 1
      %p39 = por %p37, %p38
      %p40 = scmp.ne.s32.totalorder %s29, %s30
      %p41 = scmp.eq.s32.totalorder %s21, 0
      %p42 = por %p40, %p41
      %p43 = scmp.ne.s32.totalorder %s29, %s30
      %p44 = scmp.eq.s32.totalorder %s22, 1
      %p45 = por %p43, %p44
      %p47 = scmp.ne.s32.totalorder %s30, %s46
      %p48 = scmp.eq.s32.totalorder %s22, 0
      %p49 = por %p47, %p48
      %s51 = sadd.s32 %s50, 1
      %p54 = scmp.eq.s32.totalorder %s16, 1
      %p55 = scmp.ne.s32.totalorder %s50, %s52
      %p56 = scmp.eq.s32.totalorder %s16, 0
      %p57 = por %p55, %p56
      %p58 = scmp.ne.s32.totalorder %s50, %s52
      %p59 = scmp.eq.s32.totalorder %s21, 1
      %p60 = por %p58, %p59
      %p61 = scmp.ne.s32.totalorder %s52, %s53
      %p62 = scmp.eq.s32.totalorder %s21, 0
      %p63 = por %p61, %p62
      %p64 = scmp.ne.s32.totalorder %s52, %s53
      %p65 = scmp.eq.s32.totalorder %s22, 1
      %p66 = por %p64, %p65
      %p68 = scmp.ne.s32.totalorder %s53, %s67
      %p69 = scmp.eq.s32.totalorder %s22, 0
      %p70 = por %p68, %p69
      %s72 = sadd.s32 %s71, 1
      %p75 = scmp.eq.s32.totalorder %s16, 1
      %p76 = scmp.ne.s32.totalorder %s71, %s73
      %p77 = scmp.eq.s32.totalorder %s16, 0
      %p78 = por %p76, %p77
      %p79 = scmp.ne.s32.totalorder %s71, %s73
      %p80 = scmp.eq.s32.totalorder %s21, 1
      %p81 = por %p79, %p80
      %p82 = scmp.ne.s32.totalorder %s73, %s74
      %p83 = scmp.eq.s32.totalorder %s21, 0
      %p84 = por %p82, %p83
      %p85 = scmp.ne.s32.totalorder %s73, %s74
      %p86 = scmp.eq.s32.totalorder %s22, 1
      %p87 = por %p85, %p86
      %p89 = scmp.ne.s32.totalorder %s74, %s88
      %p90 = scmp.eq.s32.totalorder %s22, 0
      %p91 = por %p89, %p90
      %s93 = sadd.s32 %s92, 1
      %p96 = scmp.eq.s32.totalorder %s16, 1
      %p97 = scmp.ne.s32.totalorder %s92, %s94
      %p98 = scmp.eq.s32.totalorder %s16, 0
      %p99 = por %p97, %p98
      %p100 = scmp.ne.s32.totalorder %s92, %s94
      %p101 = scmp.eq.s32.totalorder %s21, 1
      %p102 = por %p100, %p101
      %p103 = scmp.ne.s32.totalorder %s94, %s95
      %p104 = scmp.eq.s32.totalorder %s21, 0
      %p105 = por %p103, %p104
      %p106 = scmp.ne.s32.totalorder %s94, %s95
      %p107 = scmp.eq.s32.totalorder %s22, 1
      %p108 = por %p106, %p107
      %p110 = scmp.ne.s32.totalorder %s95, %s109
      %p111 = scmp.eq.s32.totalorder %s22, 0
      %p112 = por %p110, %p111
      %s114 = sadd.s32 %s113, 1
      %p117 = scmp.eq.s32.totalorder %s16, 1
      %p118 = scmp.ne.s32.totalorder %s113, %s115
      %p119 = scmp.eq.s32.totalorder %s16, 0
      %p120 = por %p118, %p119
      %p121 = scmp.ne.s32.totalorder %s113, %s115
      %p122 = scmp.eq.s32.totalorder %s21, 1
      %p123 = por %p121, %p122
      %p124 = scmp.ne.s32.totalorder %s115, %s116
      %p125 = scmp.eq.s32.totalorder %s21, 0
      %p126 = por %p124, %p125
      %p127 = scmp.ne.s32.totalorder %s115, %s116
      %p128 = scmp.eq.s32.totalorder %s22, 1
      %p129 = por %p127, %p128
      %p131 = scmp.ne.s32.totalorder %s116, %s130
      %p132 = scmp.eq.s32.totalorder %s22, 0
      %p133 = por %p131, %p132
      %s134 = ssub.s32 %s16, %s23
      %p135 = scmp.eq.s32.totalorder %s134, 0
      %s137 = sadd.s32 %s136, 1
      %s138 = scalar_select %p135, %s136, %s137
      %p141 = pneg %p135
      %p142 = scmp.eq.s32.totalorder %s16, 1
      %p143 = por %p141, %p142
      %p144 = scmp.ne.s32.totalorder %s136, %s139
      %p145 = scmp.eq.s32.totalorder %s16, 0
      %p146 = por %p144, %p145
      %p147 = scmp.ne.s32.totalorder %s136, %s139
      %p148 = scmp.eq.s32.totalorder %s21, 1
      %p149 = por %p147, %p148
      %p150 = scmp.ne.s32.totalorder %s139, %s140
      %p151 = scmp.eq.s32.totalorder %s21, 0
      %p152 = por %p150, %p151
      %p153 = scmp.ne.s32.totalorder %s139, %s140
      %p154 = scmp.eq.s32.totalorder %s22, 1
      %p155 = por %p153, %p154
      %p157 = scmp.ne.s32.totalorder %s140, %s156
      %p158 = scmp.eq.s32.totalorder %s22, 0
      %p159 = por %p157, %p158
      %p160 = scmp.le.s32.totalorder 1, %s16
      %p161 = scmp.lt.s32.totalorder %s16, 3
      %p162 = pnand %p160, %p161
      %p163 = pneg %p162
      // Predicated region
      $region9: #{forward.1} parent=5 // pred_check
        _
      $region10: #{forward.1} parent=5 // pred_check_branch
        %165 = sbr.rel (%p162) target = $region12
      $region11: #{forward.1} parent=5 // pred_region
        %s166 = ssub.s32 %s16, 1
        // Predicated region
        $region13: #{forward.1} parent=11 // pred_check
          %p167 = pneg %p63
        $region14: #{forward.1} parent=11 // pred_check_branch
          %169 = sbr.rel (%p167) target = $region16
        $region15: #{forward.1} parent=11 // pred_region
          %s171 = ssub.s32 1024, 1024
          %172 = vsyncadd [#allocation3], %s171
          %s173 = sshll.u32 [#allocation2], 4
          %s174 = int_to_ptr.vmem [resolvable:$true] %s173
          %179 = dma.hbm_to_vmem [thread:$0]  %s1, 1024, %s174, [#allocation3], 64, 64, 4
        $region16: #{forward.1} parent=11 // pred_fallthru
          _
        // Predicated region
        $region17: #{forward.1} parent=11 // pred_check
          %p180 = pneg %p84
        $region18: #{forward.1} parent=11 // pred_check_branch
          %182 = sbr.rel (%p180) target = $region20
        $region19: #{forward.1} parent=11 // pred_region
          _
        $region20: #{forward.1} parent=11 // pred_fallthru
          _
        // Predicated region
        $region21: #{forward.1} parent=11 // pred_check
          %p183 = pneg %p105
        $region22: #{forward.1} parent=11 // pred_check_branch
          %185 = sbr.rel (%p183) target = $region24
        $region23: #{forward.1} parent=11 // pred_region
          %s187 = ssub.s32 1024, 1024
          %188 = vsyncadd [#allocation6], %s187
          %s189 = sshll.u32 [#allocation5], 4
          %s190 = int_to_ptr.vmem [resolvable:$true] %s189
          %195 = dma.hbm_to_vmem [thread:$0]  %s3, 1024, %s190, [#allocation6], 64, 64, 4
        $region24: #{forward.1} parent=11 // pred_fallthru
          _
        // Predicated region
        $region25: #{forward.1} parent=11 // pred_check
          %p196 = pneg %p126
        $region26: #{forward.1} parent=11 // pred_check_branch
          %198 = sbr.rel (%p196) target = $region28
        $region27: #{forward.1} parent=11 // pred_region
          _
        $region28: #{forward.1} parent=11 // pred_fallthru
          _
      $region12: #{forward.1} parent=5 // pred_fallthru
        _
      %p199 = scmp.lt.s32.totalorder %s16, 2
      // Predicated region
      $region29: #{forward.1} parent=5 // pred_check
        %p200 = pneg %p199
      $region30: #{forward.1} parent=5 // pred_check_branch
        %202 = sbr.rel (%p200) target = $region32
      $region31: #{forward.1} parent=5 // pred_region
        // Predicated region
        $region33: #{forward.1} parent=31 // pred_check
          %p203 = pneg %p36
        $region34: #{forward.1} parent=31 // pred_check_branch
          %205 = sbr.rel (%p203) target = $region36
        $region35: #{forward.1} parent=31 // pred_region
          %p206 = scmp.lt.s32.totalorder %s16, 1
          %s207 = scalar_select %p206, %s16, 1
          %s208 = smul.addr %s207, 8
          %s209 = scalar_lea.vmem %s0, %s208
        $region36: #{forward.1} parent=31 // pred_fallthru
          _
      $region32: #{forward.1} parent=5 // pred_fallthru
        _
      %p210 = scmp.le.s32.totalorder 1, %s16
      %p211 = scmp.lt.s32.totalorder %s16, 3
      %p212 = pnand %p210, %p211
      %p213 = pneg %p212
      // Predicated region
      $region37: #{forward.1} parent=5 // pred_check
        _
      $region38: #{forward.1} parent=5 // pred_check_branch
        %215 = sbr.rel (%p212) target = $region40
      $region39: #{forward.1} parent=5 // pred_region
        %s216 = ssub.s32 %s16, 1
        // Predicated region
        $region41: #{forward.1} parent=39 // pred_check
          %p217 = pneg %p63
        $region42: #{forward.1} parent=39 // pred_check_branch
          %219 = sbr.rel (%p217) target = $region44
        $region43: #{forward.1} parent=39 // pred_region
          %220 = dma.done [#allocation3], 1024
        $region44: #{forward.1} parent=39 // pred_fallthru
          _
        // Predicated region
        $region45: #{forward.1} parent=39 // pred_check
          %p221 = pneg %p105
        $region46: #{forward.1} parent=39 // pred_check_branch
          %223 = sbr.rel (%p221) target = $region48
        $region47: #{forward.1} parent=39 // pred_region
          %224 = dma.done [#allocation6], 1024
        $region48: #{forward.1} parent=39 // pred_fallthru
          _
        %p225 = scmp.lt.s32.totalorder %s21, 1
        %s226 = scalar_select %p225, %s21, 1
        %s227 = smul.addr %s226, 8
        %s228 = scalar_lea.vmem %s0, %s227
        %p229 = pneg %p42
        %p230 = pneg %p39
        %p231 = pneg %p63
        %p232 = pneg %p60
        %p233 = pneg %p84
        %p234 = pneg %p81
        %p235 = pneg %p105
        %p236 = pneg %p102
        %p237 = pneg %p126
        %p238 = pneg %p123
        %p239 = pneg %p152
        %p240 = pneg %p149
        %s241 = sand.u32 %s139, 1
        %s242 = scalar_lea.sflag [#allocation4], %s241
        %s243 = sand.u32 %s139, 1
        %s244 = smul.addr %s243, 8
        %s245 = scalar_lea.vmem [#allocation7], %s244
        %p246 = scmp.lt.s32.totalorder %s21, 1
        %s247 = scalar_select %p246, %s21, 1
        %s248 = smul.addr %s247, 8
        %s249 = scalar_lea.vmem %s0, %s248
        %v251 = vld [vmem:[%s249] sm:$0xff]
        %v252 = vpack.c.bf16 %v251, %v251
        %v253 = vld [vmem:[#allocation2] sm:$0xf]
        %v254 = vld [vmem:[#allocation2 + $0x4] sm:$0xf]
        %v255 = vld [vmem:[#allocation2 + $0x8] sm:$0xf]
        %v256 = vld [vmem:[#allocation2 + $0xc] sm:$0xf]
        %v257 = vld [vmem:[#allocation2 + $0x10] sm:$0xf]
        %v258 = vld [vmem:[#allocation2 + $0x14] sm:$0xf]
        %v259 = vld [vmem:[#allocation2 + $0x18] sm:$0xf]
        %v260 = vld [vmem:[#allocation2 + $0x1c] sm:$0xf]
        %v261 = vld [vmem:[#allocation2 + $0x20] sm:$0xf]
        %v262 = vld [vmem:[#allocation2 + $0x24] sm:$0xf]
        %v263 = vld [vmem:[#allocation2 + $0x28] sm:$0xf]
        %v264 = vld [vmem:[#allocation2 + $0x2c] sm:$0xf]
        %v265 = vld [vmem:[#allocation2 + $0x30] sm:$0xf]
        %v266 = vld [vmem:[#allocation2 + $0x34] sm:$0xf]
        %v267 = vld [vmem:[#allocation2 + $0x38] sm:$0xf]
        %v268 = vld [vmem:[#allocation2 + $0x3c] sm:$0xf]
        %v269 = vld [vmem:[%s2] sm:$0x1]
        %v271 = vlaneseq
        %v272 = vshrl.u32 %v271, 7
        %v273 = vsub.s32 0, %v272
        %v274 = vrot.slane %v269, %v273
        %v292 = vunpack.c.l.b16 %v253
        %v293 = vunpack.c.l.b16 %v254
        %v294 = vunpack.c.l.b16 %v255
        %v295 = vunpack.c.l.b16 %v256
        %v296 = vunpack.c.l.b16 %v257
        %v297 = vunpack.c.l.b16 %v258
        %v298 = vunpack.c.l.b16 %v259
        %v299 = vunpack.c.l.b16 %v260
        %v300 = vunpack.c.l.b16 %v261
        %v301 = vunpack.c.l.b16 %v262
        %v302 = vunpack.c.l.b16 %v263
        %v303 = vunpack.c.l.b16 %v264
        %v304 = vunpack.c.l.b16 %v265
        %v305 = vunpack.c.l.b16 %v266
        %v306 = vunpack.c.l.b16 %v267
        %v307 = vunpack.c.l.b16 %v268
        %v308 = vpack.c.b16 %v293, %v292
        %v309 = vpack.c.b16 %v295, %v294
        %v310 = vpack.c.b16 %v297, %v296
        %v311 = vpack.c.b16 %v299, %v298
        %v312 = vpack.c.b16 %v301, %v300
        %v313 = vpack.c.b16 %v303, %v302
        %v314 = vpack.c.b16 %v305, %v304
        %v315 = vpack.c.b16 %v307, %v306
        %324 = vmatprep.subr.bf16.mxu0 0
        %325 = vmatpush1.bf16.msra.mxu0 %v308
        %326 = vmatprep.subr.bf16.mxu0 0
        %327 = vmatpush1.bf16.msra.mxu0 %v309
        %328 = vmatprep.subr.bf16.mxu0 0
        %329 = vmatpush1.bf16.msra.mxu0 %v310
        %330 = vmatprep.subr.bf16.mxu0 0
        %331 = vmatpush1.bf16.msra.mxu0 %v311
        %332 = vmatprep.subr.bf16.mxu0 0
        %333 = vmatpush1.bf16.msra.mxu0 %v312
        %334 = vmatprep.subr.bf16.mxu0 0
        %335 = vmatpush1.bf16.msra.mxu0 %v313
        %336 = vmatprep.subr.bf16.mxu0 0
        %337 = vmatpush1.bf16.msra.mxu0 %v314
        %338 = vmatprep.subr.bf16.mxu0 0
        %339 = vmatpush1.bf16.msra.mxu0 %v315
        %340 = vmatprep.subr.bf16.mxu0 0
        %341 = vmatpush1.bf16.msra.mxu0 0
        %342 = vmatprep.subr.bf16.mxu0 0
        %343 = vmatpush1.bf16.msra.mxu0 0
        %344 = vmatprep.subr.bf16.mxu0 0
        %345 = vmatpush1.bf16.msra.mxu0 0
        %346 = vmatprep.subr.bf16.mxu0 0
        %347 = vmatpush1.bf16.msra.mxu0 0
        %348 = vmatprep.subr.bf16.mxu0 0
        %349 = vmatpush1.bf16.msra.mxu0 0
        %350 = vmatprep.subr.bf16.mxu0 0
        %351 = vmatpush1.bf16.msra.mxu0 0
        %352 = vmatprep.subr.bf16.mxu0 0
        %353 = vmatpush1.bf16.msra.mxu0 0
        %354 = vmatprep.subr.bf16.mxu0 0
        %355 = vmatpush1.bf16.msra.mxu0 0
        %356 = vmatprep.mubr.bf16.mxu0 0
        %357 = vmatmul.mubr.bf16.gmra.mrb[0].mxu0 %v252
        %v358 = vpop.f32.mrb[0].mxu0
        %v359 = vadd.f32 %v274, %v358
        %v360 = vpop.f32.mrb[0].mxu0
        %v361 = vpop.f32.mrb[0].mxu0
        %v362 = vpop.f32.mrb[0].mxu0
        %363 = vdwg.mxu0
        %v364 = vmax.f32 %v359, 0.0
        %v365 = vpack.c.bf16 %v364, %v364
        %v366 = vld [vmem:[#allocation5] sm:$0xf]
        %v367 = vld [vmem:[#allocation5 + $0x4] sm:$0xf]
        %v368 = vld [vmem:[#allocation5 + $0x8] sm:$0xf]
        %v369 = vld [vmem:[#allocation5 + $0xc] sm:$0xf]
        %v370 = vld [vmem:[#allocation5 + $0x10] sm:$0xf]
        %v371 = vld [vmem:[#allocation5 + $0x14] sm:$0xf]
        %v372 = vld [vmem:[#allocation5 + $0x18] sm:$0xf]
        %v373 = vld [vmem:[#allocation5 + $0x1c] sm:$0xf]
        %v374 = vld [vmem:[#allocation5 + $0x20] sm:$0xf]
        %v375 = vld [vmem:[#allocation5 + $0x24] sm:$0xf]
        %v376 = vld [vmem:[#allocation5 + $0x28] sm:$0xf]
        %v377 = vld [vmem:[#allocation5 + $0x2c] sm:$0xf]
        %v378 = vld [vmem:[#allocation5 + $0x30] sm:$0xf]
        %v379 = vld [vmem:[#allocation5 + $0x34] sm:$0xf]
        %v380 = vld [vmem:[#allocation5 + $0x38] sm:$0xf]
        %v381 = vld [vmem:[#allocation5 + $0x3c] sm:$0xf]
        %v382 = vld [vmem:[%s4] sm:$0x1]
        %v384 = vlaneseq
        %v385 = vshrl.u32 %v384, 7
        %v386 = vsub.s32 0, %v385
        %v387 = vrot.slane %v382, %v386
        %v405 = vunpack.c.l.b16 %v366
        %v406 = vunpack.c.l.b16 %v367
        %v407 = vunpack.c.l.b16 %v368
        %v408 = vunpack.c.l.b16 %v369
        %v409 = vunpack.c.l.b16 %v370
        %v410 = vunpack.c.l.b16 %v371
        %v411 = vunpack.c.l.b16 %v372
        %v412 = vunpack.c.l.b16 %v373
        %v413 = vunpack.c.l.b16 %v374
        %v414 = vunpack.c.l.b16 %v375
        %v415 = vunpack.c.l.b16 %v376
        %v416 = vunpack.c.l.b16 %v377
        %v417 = vunpack.c.l.b16 %v378
        %v418 = vunpack.c.l.b16 %v379
        %v419 = vunpack.c.l.b16 %v380
        %v420 = vunpack.c.l.b16 %v381
        %v421 = vpack.c.b16 %v406, %v405
        %v422 = vpack.c.b16 %v408, %v407
        %v423 = vpack.c.b16 %v410, %v409
        %v424 = vpack.c.b16 %v412, %v411
        %v425 = vpack.c.b16 %v414, %v413
        %v426 = vpack.c.b16 %v416, %v415
        %v427 = vpack.c.b16 %v418, %v417
        %v428 = vpack.c.b16 %v420, %v419
        %437 = vmatprep.subr.bf16.mxu0 0
        %438 = vmatpush1.bf16.msra.mxu0 %v421
        %439 = vmatprep.subr.bf16.mxu0 0
        %440 = vmatpush1.bf16.msra.mxu0 %v422
        %441 = vmatprep.subr.bf16.mxu0 0
        %442 = vmatpush1.bf16.msra.mxu0 %v423
        %443 = vmatprep.subr.bf16.mxu0 0
        %444 = vmatpush1.bf16.msra.mxu0 %v424
        %445 = vmatprep.subr.bf16.mxu0 0
        %446 = vmatpush1.bf16.msra.mxu0 %v425
        %447 = vmatprep.subr.bf16.mxu0 0
        %448 = vmatpush1.bf16.msra.mxu0 %v426
        %449 = vmatprep.subr.bf16.mxu0 0
        %450 = vmatpush1.bf16.msra.mxu0 %v427
        %451 = vmatprep.subr.bf16.mxu0 0
        %452 = vmatpush1.bf16.msra.mxu0 %v428
        %453 = vmatprep.subr.bf16.mxu0 0
        %454 = vmatpush1.bf16.msra.mxu0 0
        %455 = vmatprep.subr.bf16.mxu0 0
        %456 = vmatpush1.bf16.msra.mxu0 0
        %457 = vmatprep.subr.bf16.mxu0 0
        %458 = vmatpush1.bf16.msra.mxu0 0
        %459 = vmatprep.subr.bf16.mxu0 0
        %460 = vmatpush1.bf16.msra.mxu0 0
        %461 = vmatprep.subr.bf16.mxu0 0
        %462 = vmatpush1.bf16.msra.mxu0 0
        %463 = vmatprep.subr.bf16.mxu0 0
        %464 = vmatpush1.bf16.msra.mxu0 0
        %465 = vmatprep.subr.bf16.mxu0 0
        %466 = vmatpush1.bf16.msra.mxu0 0
        %467 = vmatprep.subr.bf16.mxu0 0
        %468 = vmatpush1.bf16.msra.mxu0 0
        %469 = vmatprep.mubr.bf16.mxu0 0
        %470 = vmatmul.mubr.bf16.gmra.mrb[0].mxu0 %v365
        %v471 = vpop.f32.mrb[0].mxu0
        %v472 = vadd.f32 %v387, %v471
        %v473 = vpop.f32.mrb[0].mxu0
        %v474 = vpop.f32.mrb[0].mxu0
        %v475 = vpop.f32.mrb[0].mxu0
        %476 = vdwg.mxu0
        %v477 = vadd.f32 %v251, %v472
        %478 = vst [vmem:[%s245] sm:$0xff] %v477
        %s479 = sand.u32 %s139, 1
        %s480 = scalar_lea.sflag [#allocation4], %s479
        %s481 = sand.u32 %s139, 1
        %s482 = smul.addr %s481, 8
        %s483 = scalar_lea.vmem [#allocation7], %s482
        // Predicated region
        $region49: #{forward.1} parent=39 // pred_check
          %p484 = pneg %p149
        $region50: #{forward.1} parent=39 // pred_check_branch
          %486 = sbr.rel (%p484) target = $region52
        $region51: #{forward.1} parent=39 // pred_region
          %s488 = ssub.s32 128, 128
          %489 = vsyncadd %s480, %s488
          %s490 = smul.addr %s21, 128
          %s491 = scalar_lea.hbm %s5, %s490
          %s493 = sshll.u32 %s483, 4
          %s494 = int_to_ptr.vmem [resolvable:$true] %s493
          %496 = dma.vmem_to_hbm [thread:$0]  %s494, 128, %s491, %s480
        $region52: #{forward.1} parent=39 // pred_fallthru
          _
      $region40: #{forward.1} parent=5 // pred_fallthru
        _
      %p497 = scmp.le.s32.totalorder 2, %s16
      // Predicated region
      $region53: #{forward.1} parent=5 // pred_check
        %p498 = pneg %p497
      $region54: #{forward.1} parent=5 // pred_check_branch
        %500 = sbr.rel (%p498) target = $region56
      $region55: #{forward.1} parent=5 // pred_region
        %s501 = ssub.s32 %s16, 2
        // Predicated region
        $region57: #{forward.1} parent=55 // pred_check
          %p502 = pneg %p155
        $region58: #{forward.1} parent=55 // pred_check_branch
          %504 = sbr.rel (%p502) target = $region60
        $region59: #{forward.1} parent=55 // pred_region
          %s505 = sand.u32 %s140, 1
          %s506 = scalar_lea.sflag [#allocation4], %s505
          %s507 = sand.u32 %s140, 1
          %s508 = smul.addr %s507, 8
          %s509 = scalar_lea.vmem [#allocation7], %s508
          %510 = dma.done %s506, 128
        $region60: #{forward.1} parent=55 // pred_fallthru
          _
      $region56: #{forward.1} parent=5 // pred_fallthru
        _
    $region6: #{forward.1} parent=1 // loop_footer
      %s20 = sadd.s32 1, %s16
    $region7: #{forward.1} parent=1 // loop_footer_branch
      %15 = sbr.rel target = $region3
    $region8: #{forward.1} parent=1 // loop_exit
      _
    %511 = vsyncpa [#allocation3], 1
    %s512 = scalar_lea.sflag [#allocation3], 1
    %513 = vsyncpa %s512, 1
    %514 = vsyncpa [#allocation6], 1
    %515 = vsyncpa [#allocation4], 1
    %s516 = scalar_lea.sflag [#allocation4], 1
    %517 = vsyncpa %s516, 1

</llo_original>
